<compile_context>
chip_gen: v5e
topology: v5e:2x2
jax: 0.10.0
libtpu: 0.0.40
codegen_flags: <defaults>
</compile_context>

<pallas_src>
import functools

import jax
import jax.numpy as jnp
from jax.experimental import pallas as pl
from jax.experimental.pallas import tpu as pltpu


def _csam_kernel(x_ref, prev_ref, next_ref, w_ref, scal_ref, o_ref, *, C, W, T):
    # x_ref:    (1, C, T)     VMEM  current H-tile, (h, w) flattened on lanes
    # prev_ref: (1, 1, C, W)  VMEM  row just above the tile (zeros at h == -1)
    # next_ref: (1, 1, C, W)  VMEM  row just below the tile (zeros at h == H)
    # w_ref:    (27,)         SMEM  3x3x3 conv weight, (kd, kh, kw) row-major
    # scal_ref: (2,)          SMEM  [bias, gamma]
    # o_ref:    (1, C, T)     VMEM  output tile
    xc = x_ref[0]                      # (C, T)
    prv = prev_ref[0, 0]               # (C, W)
    nxt = next_ref[0, 0]               # (C, W)

    # Hoisted scalar reads: 27 weights + bias + gamma, once, before the loop.
    wgt = [[[w_ref[(kd * 3 + kh) * 3 + kw] for kw in range(3)]
            for kh in range(3)] for kd in range(3)]
    bias = scal_ref[0]
    gamma = scal_ref[1]

    # Working buffer: [zero col | prev halo row | tile | next halo row | zero col].
    # Lane u holds flattened position (tile_start + u - (W + 1)); the two zero
    # columns catch the corner taps of the first/last output lane so every tap
    # below is a static, in-bounds lane slice.
    zcol = jnp.zeros((C, 1), jnp.float32)
    buf = jnp.concatenate([zcol, prv, xc, nxt, zcol], axis=1)   # (C, T + 2W + 2)

    # W-boundary masks (zero padding along the width axis).  The H boundary is
    # handled by the halo rows; the C boundary by the accumulator shifts below.
    w_idx = jax.lax.broadcasted_iota(jnp.int32, (C, T), 1) % W
    mask_l = w_idx >= 1                # tap column kw == 0 is valid
    mask_r = w_idx <= W - 2            # tap column kw == 2 is valid

    # 9 spatially shifted slabs (hoisted out of the kd loop); each feeds three
    # per-kd partial accumulators (27 FMAs total).
    p0 = jnp.zeros((C, T), jnp.float32)
    p1 = jnp.zeros((C, T), jnp.float32)
    p2 = jnp.zeros((C, T), jnp.float32)
    for kh in range(3):
        for kw in range(3):
            off = (kh - 1) * W + (kw - 1) + (W + 1)   # static slice start
            xs = buf[:, off:off + T]                  # lane shift (XLU)
            if kw == 0:
                xs = jnp.where(mask_l, xs, 0.0)
            elif kw == 2:
                xs = jnp.where(mask_r, xs, 0.0)
            p0 = p0 + wgt[0][kh][kw] * xs
            p1 = p1 + wgt[1][kh][kw] * xs
            p2 = p2 + wgt[2][kh][kw] * xs

    # Combine along the channel (= conv depth) axis with zero padding:
    #   conv[c] = p0[c-1] + p1[c] + p2[c+1]
    zrow = jnp.zeros((1, T), jnp.float32)
    conv = p1
    conv = conv + jnp.concatenate([zrow, p0[:C - 1, :]], axis=0)
    conv = conv + jnp.concatenate([p2[1:, :], zrow], axis=0)

    att = jax.nn.sigmoid(conv + bias)   # EUP
    gated = gamma * att
    o_ref[0] = xc * gated + xc


def _auto_tile_h(H, W, target_lanes=512):
    """Largest tile_h dividing H whose flattened width tile_h*W is a multiple
    of 128 lanes and <= target_lanes; falls back to a single tile (full H)."""
    best = H
    for th in range(1, H + 1):
        t = th * W
        if H % th == 0 and t % 128 == 0 and t <= target_lanes:
            best = th
    return best


def channel_spatial_attention(x, conv_w, conv_b, gamma, *, tile_h=None):
    """Pallas TPU forward of Channel_Spatial_Attention_Module.

    x:      (B, C, H, W) float32
    conv_w: (3, 3, 3)    float32   (Conv3d(1,1,3,1,1) weight, squeezed)
    conv_b: scalar       float32
    gamma:  scalar       float32
    """
    B, C, H, W = x.shape
    x = x.astype(jnp.float32)

    if tile_h is None:
        tile_h = _auto_tile_h(H, W)
    assert H % tile_h == 0, "tile_h must divide H"
    T = tile_h * W
    assert (T % 128 == 0) or tile_h == H, \
        "tile_h*W must be a multiple of 128 lanes (or a single tile)"
    n_ht = H // tile_h

    # Lane-dense view: (h, w) flattened onto the lane axis (reshape of a
    # contiguous array is metadata-only, no extra HBM traffic).
    x_flat = x.reshape(B, C, H * W)

    # Halo rows (one row above / below each H-tile), re-read as tiny side
    # inputs (~2 rows per tile) instead of padding x.  Boundary tiles get zero
    # rows, which implements the conv's zero padding along H.
    zero_row = jnp.zeros((B, 1, C, W), jnp.float32)
    if n_ht > 1:
        prev_rows = jnp.transpose(x[:, :, tile_h - 1:H - 1:tile_h, :], (0, 2, 1, 3))
        next_rows = jnp.transpose(x[:, :, tile_h:H:tile_h, :], (0, 2, 1, 3))
        prev_halo = jnp.concatenate([zero_row, prev_rows], axis=1)   # (B, n_ht, C, W)
        next_halo = jnp.concatenate([next_rows, zero_row], axis=1)   # (B, n_ht, C, W)
    else:
        prev_halo = zero_row
        next_halo = zero_row

    w_flat = conv_w.reshape(27).astype(jnp.float32)
    scal = jnp.stack([jnp.asarray(conv_b, jnp.float32),
                      jnp.asarray(gamma, jnp.float32)])

    kernel = functools.partial(_csam_kernel, C=C, W=W, T=T)

    out_flat = pl.pallas_call(
        kernel,
        out_shape=jax.ShapeDtypeStruct((B, C, H * W), jnp.float32),
        grid=(B, n_ht),
        in_specs=[
            pl.BlockSpec((1, C, T), lambda b, j: (b, 0, j)),
            pl.BlockSpec((1, 1, C, W), lambda b, j: (b, j, 0, 0)),
            pl.BlockSpec((1, 1, C, W), lambda b, j: (b, j, 0, 0)),
            pl.BlockSpec(memory_space=pltpu.MemorySpace.SMEM),
            pl.BlockSpec(memory_space=pltpu.MemorySpace.SMEM),
        ],
        out_specs=pl.BlockSpec((1, C, T), lambda b, j: (b, 0, j)),
        compiler_params=pltpu.CompilerParams(
            dimension_semantics=("parallel", "parallel"),
            vmem_limit_bytes=32 * 1024 * 1024),
    )(x_flat, prev_halo, next_halo, w_flat, scal)

    return out_flat.reshape(B, C, H, W)


def _reference(x, conv_w, conv_b, gamma):
    """Pure-JAX reference of the PyTorch forward."""
    B, C, H, W = x.shape
    lhs = x[:, None].astype(jnp.float32)                  # (B,1,C,H,W)
    rhs = conv_w[None, None].astype(jnp.float32)          # (1,1,3,3,3)
    out = jax.lax.conv_general_dilated(
        lhs, rhs, window_strides=(1, 1, 1),
        padding=[(1, 1), (1, 1), (1, 1)],
        dimension_numbers=("NCDHW", "OIDHW", "NCDHW"))
    out = jax.nn.sigmoid(out + conv_b)
    out = gamma * out
    out = out.reshape(B, C, H, W)
    return x * out + x


if __name__ == "__main__":
    key = jax.random.PRNGKey(0)
    k_x, k_w, k_b = jax.random.split(key, 3)

    B, C, H, W = 2, 4, 16, 16
    x = jax.random.normal(k_x, (B, C, H, W), dtype=jnp.float32)

    # Conv3d(1,1,3,1,1) -> weight (1,1,3,3,3) squeezed to (3,3,3), bias scalar.
    conv_w = jax.random.normal(k_w, (3, 3, 3), dtype=jnp.float32) * 0.1
    conv_b = (jax.random.normal(k_b, ()) * 0.1).astype(jnp.float32)
    initial_gamma = jnp.float32(0.5)       # self.gamma = Parameter([initial_gamma])

    y_ref = _reference(x, conv_w, conv_b, initial_gamma)

    # Multi-tile grid (exercises halo rows + boundary zeros): grid = (2, 2).
    y = channel_spatial_attention(x, conv_w, conv_b, initial_gamma, tile_h=8)
    y = jax.block_until_ready(y)
    assert y.shape == (B, C, H, W)
    assert jnp.allclose(y, y_ref, atol=1e-5, rtol=1e-5), "mismatch (tile_h=8)"

    # Single-tile grid (auto tile pick) must agree as well.
    y1 = channel_spatial_attention(x, conv_w, conv_b, initial_gamma)
    y1 = jax.block_until_ready(y1)
    assert jnp.allclose(y1, y_ref, atol=1e-5, rtol=1e-5), "mismatch (auto tile)"

    print("KERNEL_OK")
</pallas_src>

<mosaic_0001>
module attributes {stable_mosaic.version = 11 : i64} {
  func.func @_csam_kernel(%arg0: i32, %arg1: i32, %arg2: memref<1x4x128xf32, #tpu.memory_space<vmem>>, %arg3: memref<1x1x4x16xf32, #tpu.memory_space<vmem>>, %arg4: memref<1x1x4x16xf32, #tpu.memory_space<vmem>>, %arg5: memref<27xf32, #tpu.memory_space<smem>>, %arg6: memref<2xf32, #tpu.memory_space<smem>>, %arg7: memref<1x4x128xf32, #tpu.memory_space<vmem>>) attributes {dimension_semantics = [#tpu.dimension_semantics<parallel>, #tpu.dimension_semantics<parallel>], iteration_bounds = array<i64: 2, 2>, scalar_prefetch = 0 : i64, scratch_operands = 0 : i64, tpu.core_type = #tpu.core_type<tc>, window_params = [{transform_indices = @transform_0, window_bounds = array<i64: 1, 4, 128>}, {transform_indices = @transform_1, window_bounds = array<i64: 1, 1, 4, 16>}, {transform_indices = @transform_2, window_bounds = array<i64: 1, 1, 4, 16>}, {transform_indices = @transform_3, window_bounds = array<i64: 27>}, {transform_indices = @transform_4, window_bounds = array<i64: 2>}, {transform_indices = @transform_5, window_bounds = array<i64: 1, 4, 128>}]} {
    %c0 = arith.constant 0 : index
    %c0_0 = arith.constant 0 : index
    %c0_1 = arith.constant 0 : index
    %0 = vector.load %arg2[%c0, %c0_0, %c0_1] : memref<1x4x128xf32, #tpu.memory_space<vmem>>, vector<1x4x128xf32>
    %1 = vector.shape_cast %0 : vector<1x4x128xf32> to vector<4x128xf32>
    %c0_2 = arith.constant 0 : index
    %c0_3 = arith.constant 0 : index
    %c0_4 = arith.constant 0 : index
    %c0_5 = arith.constant 0 : index
    %2 = vector.load %arg3[%c0_2, %c0_3, %c0_4, %c0_5] : memref<1x1x4x16xf32, #tpu.memory_space<vmem>>, vector<1x1x4x16xf32>
    %3 = vector.shape_cast %2 : vector<1x1x4x16xf32> to vector<4x16xf32>
    %c0_6 = arith.constant 0 : index
    %c0_7 = arith.constant 0 : index
    %c0_8 = arith.constant 0 : index
    %c0_9 = arith.constant 0 : index
    %4 = vector.load %arg4[%c0_6, %c0_7, %c0_8, %c0_9] : memref<1x1x4x16xf32, #tpu.memory_space<vmem>>, vector<1x1x4x16xf32>
    %5 = vector.shape_cast %4 : vector<1x1x4x16xf32> to vector<4x16xf32>
    %c0_10 = arith.constant 0 : index
    %6 = memref.load %arg5[%c0_10] : memref<27xf32, #tpu.memory_space<smem>>
    %c1 = arith.constant 1 : index
    %7 = memref.load %arg5[%c1] : memref<27xf32, #tpu.memory_space<smem>>
    %c2 = arith.constant 2 : index
    %8 = memref.load %arg5[%c2] : memref<27xf32, #tpu.memory_space<smem>>
    %c3 = arith.constant 3 : index
    %9 = memref.load %arg5[%c3] : memref<27xf32, #tpu.memory_space<smem>>
    %c4 = arith.constant 4 : index
    %10 = memref.load %arg5[%c4] : memref<27xf32, #tpu.memory_space<smem>>
    %c5 = arith.constant 5 : index
    %11 = memref.load %arg5[%c5] : memref<27xf32, #tpu.memory_space<smem>>
    %c6 = arith.constant 6 : index
    %12 = memref.load %arg5[%c6] : memref<27xf32, #tpu.memory_space<smem>>
    %c7 = arith.constant 7 : index
    %13 = memref.load %arg5[%c7] : memref<27xf32, #tpu.memory_space<smem>>
    %c8 = arith.constant 8 : index
    %14 = memref.load %arg5[%c8] : memref<27xf32, #tpu.memory_space<smem>>
    %c9 = arith.constant 9 : index
    %15 = memref.load %arg5[%c9] : memref<27xf32, #tpu.memory_space<smem>>
    %c10 = arith.constant 10 : index
    %16 = memref.load %arg5[%c10] : memref<27xf32, #tpu.memory_space<smem>>
    %c11 = arith.constant 11 : index
    %17 = memref.load %arg5[%c11] : memref<27xf32, #tpu.memory_space<smem>>
    %c12 = arith.constant 12 : index
    %18 = memref.load %arg5[%c12] : memref<27xf32, #tpu.memory_space<smem>>
    %c13 = arith.constant 13 : index
    %19 = memref.load %arg5[%c13] : memref<27xf32, #tpu.memory_space<smem>>
    %c14 = arith.constant 14 : index
    %20 = memref.load %arg5[%c14] : memref<27xf32, #tpu.memory_space<smem>>
    %c15 = arith.constant 15 : index
    %21 = memref.load %arg5[%c15] : memref<27xf32, #tpu.memory_space<smem>>
    %c16 = arith.constant 16 : index
    %22 = memref.load %arg5[%c16] : memref<27xf32, #tpu.memory_space<smem>>
    %c17 = arith.constant 17 : index
    %23 = memref.load %arg5[%c17] : memref<27xf32, #tpu.memory_space<smem>>
    %c18 = arith.constant 18 : index
    %24 = memref.load %arg5[%c18] : memref<27xf32, #tpu.memory_space<smem>>
    %c19 = arith.constant 19 : index
    %25 = memref.load %arg5[%c19] : memref<27xf32, #tpu.memory_space<smem>>
    %c20 = arith.constant 20 : index
    %26 = memref.load %arg5[%c20] : memref<27xf32, #tpu.memory_space<smem>>
    %c21 = arith.constant 21 : index
    %27 = memref.load %arg5[%c21] : memref<27xf32, #tpu.memory_space<smem>>
    %c22 = arith.constant 22 : index
    %28 = memref.load %arg5[%c22] : memref<27xf32, #tpu.memory_space<smem>>
    %c23 = arith.constant 23 : index
    %29 = memref.load %arg5[%c23] : memref<27xf32, #tpu.memory_space<smem>>
    %c24 = arith.constant 24 : index
    %30 = memref.load %arg5[%c24] : memref<27xf32, #tpu.memory_space<smem>>
    %c25 = arith.constant 25 : index
    %31 = memref.load %arg5[%c25] : memref<27xf32, #tpu.memory_space<smem>>
    %c26 = arith.constant 26 : index
    %32 = memref.load %arg5[%c26] : memref<27xf32, #tpu.memory_space<smem>>
    %c0_11 = arith.constant 0 : index
    %33 = memref.load %arg6[%c0_11] : memref<2xf32, #tpu.memory_space<smem>>
    %c1_12 = arith.constant 1 : index
    %34 = memref.load %arg6[%c1_12] : memref<2xf32, #tpu.memory_space<smem>>
    %cst = arith.constant 0.000000e+00 : f32
    %35 = vector.broadcast %cst : f32 to vector<4x1xf32>
    %36 = tpu.concatenate %35, %3, %1, %5, %35 in 1 : vector<4x1xf32>, vector<4x16xf32>, vector<4x128xf32>, vector<4x16xf32>, vector<4x1xf32> -> vector<4x162xf32>
    %37 = tpu.iota {dimensions = array<i32: 1>} : vector<4x128xi32>
    %c16_i32 = arith.constant 16 : i32
    %c0_i32 = arith.constant 0 : i32
    %38 = arith.cmpi eq, %c16_i32, %c0_i32 : i32
    %c1_i32 = arith.constant 1 : i32
    %39 = arith.select %38, %c1_i32, %c16_i32 : i32
    %40 = vector.broadcast %39 : i32 to vector<4x128xi32>
    %41 = arith.remsi %37, %40 : vector<4x128xi32>
    %c0_i32_13 = arith.constant 0 : i32
    %42 = vector.broadcast %c0_i32_13 : i32 to vector<4x128xi32>
    %43 = arith.cmpi ne, %41, %42 : vector<4x128xi32>
    %c0_i32_14 = arith.constant 0 : i32
    %44 = vector.broadcast %c0_i32_14 : i32 to vector<4x128xi32>
    %45 = arith.cmpi slt, %41, %44 : vector<4x128xi32>
    %c0_i32_15 = arith.constant 0 : i32
    %46 = arith.cmpi slt, %39, %c0_i32_15 : i32
    %47 = vector.broadcast %46 : i1 to vector<4x128xi1>
    %48 = vector.broadcast %47 : vector<4x128xi1> to vector<4x128xi1>
    %49 = arith.xori %45, %48 : vector<4x128xi1>
    %50 = arith.andi %49, %43 : vector<4x128xi1>
    %51 = vector.broadcast %39 : i32 to vector<4x128xi32>
    %52 = arith.addi %41, %51 : vector<4x128xi32>
    %53 = arith.select %50, %52, %41 : vector<4x128xi1>, vector<4x128xi32>
    %c1_i32_16 = arith.constant 1 : i32
    %54 = vector.broadcast %c1_i32_16 : i32 to vector<4x128xi32>
    %55 = arith.cmpi sge, %53, %54 : vector<4x128xi32>
    %c14_i32 = arith.constant 14 : i32
    %56 = vector.broadcast %c14_i32 : i32 to vector<4x128xi32>
    %57 = arith.cmpi sle, %53, %56 : vector<4x128xi32>
    %cst_17 = arith.constant 0.000000e+00 : f32
    %58 = vector.broadcast %cst_17 : f32 to vector<4x128xf32>
    %cst_18 = arith.constant 0.000000e+00 : f32
    %59 = vector.broadcast %cst_18 : f32 to vector<4x128xf32>
    %cst_19 = arith.constant 0.000000e+00 : f32
    %60 = vector.broadcast %cst_19 : f32 to vector<4x128xf32>
    %61 = vector.extract_strided_slice %36 {offsets = [0, 0], sizes = [4, 128], strides = [1, 1]} : vector<4x162xf32> to vector<4x128xf32>
    %cst_20 = arith.constant 0.000000e+00 : f32
    %62 = vector.broadcast %cst_20 : f32 to vector<4x128xf32>
    %63 = arith.select %55, %61, %62 : vector<4x128xi1>, vector<4x128xf32>
    %64 = vector.broadcast %6 : f32 to vector<4x128xf32>
    %65 = arith.mulf %64, %63 : vector<4x128xf32>
    %66 = arith.addf %58, %65 : vector<4x128xf32>
    %67 = vector.broadcast %15 : f32 to vector<4x128xf32>
    %68 = arith.mulf %67, %63 : vector<4x128xf32>
    %69 = arith.addf %59, %68 : vector<4x128xf32>
    %70 = vector.broadcast %24 : f32 to vector<4x128xf32>
    %71 = arith.mulf %70, %63 : vector<4x128xf32>
    %72 = arith.addf %60, %71 : vector<4x128xf32>
    %73 = vector.extract_strided_slice %36 {offsets = [0, 1], sizes = [4, 128], strides = [1, 1]} : vector<4x162xf32> to vector<4x128xf32>
    %74 = vector.broadcast %7 : f32 to vector<4x128xf32>
    %75 = arith.mulf %74, %73 : vector<4x128xf32>
    %76 = arith.addf %66, %75 : vector<4x128xf32>
    %77 = vector.broadcast %16 : f32 to vector<4x128xf32>
    %78 = arith.mulf %77, %73 : vector<4x128xf32>
    %79 = arith.addf %69, %78 : vector<4x128xf32>
    %80 = vector.broadcast %25 : f32 to vector<4x128xf32>
    %81 = arith.mulf %80, %73 : vector<4x128xf32>
    %82 = arith.addf %72, %81 : vector<4x128xf32>
    %83 = vector.extract_strided_slice %36 {offsets = [0, 2], sizes = [4, 128], strides = [1, 1]} : vector<4x162xf32> to vector<4x128xf32>
    %cst_21 = arith.constant 0.000000e+00 : f32
    %84 = vector.broadcast %cst_21 : f32 to vector<4x128xf32>
    %85 = arith.select %57, %83, %84 : vector<4x128xi1>, vector<4x128xf32>
    %86 = vector.broadcast %8 : f32 to vector<4x128xf32>
    %87 = arith.mulf %86, %85 : vector<4x128xf32>
    %88 = arith.addf %76, %87 : vector<4x128xf32>
    %89 = vector.broadcast %17 : f32 to vector<4x128xf32>
    %90 = arith.mulf %89, %85 : vector<4x128xf32>
    %91 = arith.addf %79, %90 : vector<4x128xf32>
    %92 = vector.broadcast %26 : f32 to vector<4x128xf32>
    %93 = arith.mulf %92, %85 : vector<4x128xf32>
    %94 = arith.addf %82, %93 : vector<4x128xf32>
    %95 = vector.extract_strided_slice %36 {offsets = [0, 16], sizes = [4, 128], strides = [1, 1]} : vector<4x162xf32> to vector<4x128xf32>
    %cst_22 = arith.constant 0.000000e+00 : f32
    %96 = vector.broadcast %cst_22 : f32 to vector<4x128xf32>
    %97 = arith.select %55, %95, %96 : vector<4x128xi1>, vector<4x128xf32>
    %98 = vector.broadcast %9 : f32 to vector<4x128xf32>
    %99 = arith.mulf %98, %97 : vector<4x128xf32>
    %100 = arith.addf %88, %99 : vector<4x128xf32>
    %101 = vector.broadcast %18 : f32 to vector<4x128xf32>
    %102 = arith.mulf %101, %97 : vector<4x128xf32>
    %103 = arith.addf %91, %102 : vector<4x128xf32>
    %104 = vector.broadcast %27 : f32 to vector<4x128xf32>
    %105 = arith.mulf %104, %97 : vector<4x128xf32>
    %106 = arith.addf %94, %105 : vector<4x128xf32>
    %107 = vector.extract_strided_slice %36 {offsets = [0, 17], sizes = [4, 128], strides = [1, 1]} : vector<4x162xf32> to vector<4x128xf32>
    %108 = vector.broadcast %10 : f32 to vector<4x128xf32>
    %109 = arith.mulf %108, %107 : vector<4x128xf32>
    %110 = arith.addf %100, %109 : vector<4x128xf32>
    %111 = vector.broadcast %19 : f32 to vector<4x128xf32>
    %112 = arith.mulf %111, %107 : vector<4x128xf32>
    %113 = arith.addf %103, %112 : vector<4x128xf32>
    %114 = vector.broadcast %28 : f32 to vector<4x128xf32>
    %115 = arith.mulf %114, %107 : vector<4x128xf32>
    %116 = arith.addf %106, %115 : vector<4x128xf32>
    %117 = vector.extract_strided_slice %36 {offsets = [0, 18], sizes = [4, 128], strides = [1, 1]} : vector<4x162xf32> to vector<4x128xf32>
    %cst_23 = arith.constant 0.000000e+00 : f32
    %118 = vector.broadcast %cst_23 : f32 to vector<4x128xf32>
    %119 = arith.select %57, %117, %118 : vector<4x128xi1>, vector<4x128xf32>
    %120 = vector.broadcast %11 : f32 to vector<4x128xf32>
    %121 = arith.mulf %120, %119 : vector<4x128xf32>
    %122 = arith.addf %110, %121 : vector<4x128xf32>
    %123 = vector.broadcast %20 : f32 to vector<4x128xf32>
    %124 = arith.mulf %123, %119 : vector<4x128xf32>
    %125 = arith.addf %113, %124 : vector<4x128xf32>
    %126 = vector.broadcast %29 : f32 to vector<4x128xf32>
    %127 = arith.mulf %126, %119 : vector<4x128xf32>
    %128 = arith.addf %116, %127 : vector<4x128xf32>
    %129 = vector.extract_strided_slice %36 {offsets = [0, 32], sizes = [4, 128], strides = [1, 1]} : vector<4x162xf32> to vector<4x128xf32>
    %cst_24 = arith.constant 0.000000e+00 : f32
    %130 = vector.broadcast %cst_24 : f32 to vector<4x128xf32>
    %131 = arith.select %55, %129, %130 : vector<4x128xi1>, vector<4x128xf32>
    %132 = vector.broadcast %12 : f32 to vector<4x128xf32>
    %133 = arith.mulf %132, %131 : vector<4x128xf32>
    %134 = arith.addf %122, %133 : vector<4x128xf32>
    %135 = vector.broadcast %21 : f32 to vector<4x128xf32>
    %136 = arith.mulf %135, %131 : vector<4x128xf32>
    %137 = arith.addf %125, %136 : vector<4x128xf32>
    %138 = vector.broadcast %30 : f32 to vector<4x128xf32>
    %139 = arith.mulf %138, %131 : vector<4x128xf32>
    %140 = arith.addf %128, %139 : vector<4x128xf32>
    %141 = vector.extract_strided_slice %36 {offsets = [0, 33], sizes = [4, 128], strides = [1, 1]} : vector<4x162xf32> to vector<4x128xf32>
    %142 = vector.broadcast %13 : f32 to vector<4x128xf32>
    %143 = arith.mulf %142, %141 : vector<4x128xf32>
    %144 = arith.addf %134, %143 : vector<4x128xf32>
    %145 = vector.broadcast %22 : f32 to vector<4x128xf32>
    %146 = arith.mulf %145, %141 : vector<4x128xf32>
    %147 = arith.addf %137, %146 : vector<4x128xf32>
    %148 = vector.broadcast %31 : f32 to vector<4x128xf32>
    %149 = arith.mulf %148, %141 : vector<4x128xf32>
    %150 = arith.addf %140, %149 : vector<4x128xf32>
    %151 = vector.extract_strided_slice %36 {offsets = [0, 34], sizes = [4, 128], strides = [1, 1]} : vector<4x162xf32> to vector<4x128xf32>
    %cst_25 = arith.constant 0.000000e+00 : f32
    %152 = vector.broadcast %cst_25 : f32 to vector<4x128xf32>
    %153 = arith.select %57, %151, %152 : vector<4x128xi1>, vector<4x128xf32>
    %154 = vector.broadcast %14 : f32 to vector<4x128xf32>
    %155 = arith.mulf %154, %153 : vector<4x128xf32>
    %156 = arith.addf %144, %155 : vector<4x128xf32>
    %157 = vector.broadcast %23 : f32 to vector<4x128xf32>
    %158 = arith.mulf %157, %153 : vector<4x128xf32>
    %159 = arith.addf %147, %158 : vector<4x128xf32>
    %160 = vector.broadcast %32 : f32 to vector<4x128xf32>
    %161 = arith.mulf %160, %153 : vector<4x128xf32>
    %162 = arith.addf %150, %161 : vector<4x128xf32>
    %cst_26 = arith.constant 0.000000e+00 : f32
    %163 = vector.broadcast %cst_26 : f32 to vector<1x128xf32>
    %164 = vector.extract_strided_slice %156 {offsets = [0, 0], sizes = [3, 128], strides = [1, 1]} : vector<4x128xf32> to vector<3x128xf32>
    %165 = tpu.concatenate %163, %164 in 0 : vector<1x128xf32>, vector<3x128xf32> -> vector<4x128xf32>
    %166 = arith.addf %159, %165 : vector<4x128xf32>
    %167 = vector.extract_strided_slice %162 {offsets = [1, 0], sizes = [3, 128], strides = [1, 1]} : vector<4x128xf32> to vector<3x128xf32>
    %168 = tpu.concatenate %167, %163 in 0 : vector<3x128xf32>, vector<1x128xf32> -> vector<4x128xf32>
    %169 = arith.addf %166, %168 : vector<4x128xf32>
    %170 = vector.broadcast %33 : f32 to vector<4x128xf32>
    %171 = arith.addf %169, %170 : vector<4x128xf32>
    %172 = arith.negf %171 : vector<4x128xf32>
    %173 = math.exp %172 : vector<4x128xf32>
    %cst_27 = arith.constant 1.000000e+00 : f32
    %174 = vector.broadcast %cst_27 : f32 to vector<4x128xf32>
    %175 = arith.addf %174, %173 : vector<4x128xf32>
    %176 = arith.divf %174, %175 : vector<4x128xf32>
    %177 = vector.broadcast %34 : f32 to vector<4x128xf32>
    %178 = arith.mulf %177, %176 : vector<4x128xf32>
    %179 = arith.mulf %1, %178 : vector<4x128xf32>
    %180 = arith.addf %179, %1 : vector<4x128xf32>
    %c0_28 = arith.constant 0 : index
    %c0_29 = arith.constant 0 : index
    %c0_30 = arith.constant 0 : index
    %181 = vector.load %arg7[%c0_28, %c0_29, %c0_30] : memref<1x4x128xf32, #tpu.memory_space<vmem>>, vector<1x4x128xf32>
    %182 = vector.shape_cast %181 : vector<1x4x128xf32> to vector<4x128xf32>
    %183 = vector.shape_cast %180 : vector<4x128xf32> to vector<1x4x128xf32>
    tpu.vector_store %arg7[%c0_28, %c0_29, %c0_30], %183 {strides = array<i32>} : memref<1x4x128xf32, #tpu.memory_space<vmem>>, vector<1x4x128xf32>,
    return
  }
  func.func @transform_0(%arg0: i32, %arg1: i32) -> (i32, i32, i32) {
    %c0_i32 = arith.constant 0 : i32
    %c0_i32_0 = arith.constant 0 : i32
    return %arg0, %c0_i32, %arg1 : i32, i32, i32
  }
  func.func @transform_1(%arg0: i32, %arg1: i32) -> (i32, i32, i32, i32) {
    %c0_i32 = arith.constant 0 : i32
    %c0_i32_0 = arith.constant 0 : i32
    %c0_i32_1 = arith.constant 0 : i32
    return %arg0, %arg1, %c0_i32, %c0_i32_0 : i32, i32, i32, i32
  }
  func.func @transform_2(%arg0: i32, %arg1: i32) -> (i32, i32, i32, i32) {
    %c0_i32 = arith.constant 0 : i32
    %c0_i32_0 = arith.constant 0 : i32
    %c0_i32_1 = arith.constant 0 : i32
    return %arg0, %arg1, %c0_i32, %c0_i32_0 : i32, i32, i32, i32
  }
  func.func @transform_3(%arg0: i32, %arg1: i32) -> i32 {
    %c0_i32 = arith.constant 0 : i32
    %c0_i32_0 = arith.constant 0 : i32
    return %c0_i32 : i32
  }
  func.func @transform_4(%arg0: i32, %arg1: i32) -> i32 {
    %c0_i32 = arith.constant 0 : i32
    %c0_i32_0 = arith.constant 0 : i32
    return %c0_i32 : i32
  }
  func.func @transform_5(%arg0: i32, %arg1: i32) -> (i32, i32, i32) {
    %c0_i32 = arith.constant 0 : i32
    %c0_i32_0 = arith.constant 0 : i32
    return %arg0, %c0_i32, %arg1 : i32, i32, i32
  }
}

</mosaic_0001>

<llo_original>
// kernel: tpu_custom_call.1
$region0: #{tpu_custom_call.1}
  #allocation0 [shape = 'u32[]', space=smem, size = 0x4, offset = 0x4, fixed_abs, tag = 'smem constant byte address 0x4 - core index']
  #allocation1 [shape = 'u32[72,128]{1,0:T(1,128)}', space=vmem, size = 0x9000, scoped, tag = 'internal scratch']
  %s0 = inlined_call_operand.hbm [shape: f32[2,4,256], index: 0, kind: input, shape index: {}]
  %s1 = inlined_call_operand.hbm [shape: f32[2,2,4,16], index: 1, kind: input, shape index: {}]
  %s2 = inlined_call_operand.hbm [shape: f32[2,2,4,16], index: 2, kind: input, shape index: {}]
  %s3 = inlined_call_operand.vmem [shape: f32[27], index: 3, kind: input, shape index: {}]
  %s4 = inlined_call_operand.vmem [shape: f32[2], index: 4, kind: input, shape index: {}]
  %s5 = inlined_call_operand.hbm [shape: f32[2,4,256], index: 5, kind: output, shape index: {}]
  %s6 = sld [smem:[#allocation0]]
  $region73: #{tpu_custom_call.1} parent=0
    _
  %s8 = ssub.s32 1, %s6
  %s9 = scalar_select 0, %s8, %s6
  $region1: #{tpu_custom_call.1} parent=0
    #allocation2 [shape = 'u8[4096]{0}', space=vmem, size = 0x1000, scoped, tag = 'input window, operand 0']
    #allocation3 [shape = 's32[2]{0}', space=sflag, size = 0x8, scoped, tag = 'scoped memory for tpu_custom_call.1']
    #allocation4 [shape = 's32[2]{0}', space=sflag, size = 0x8, scoped, tag = 'scoped memory for tpu_custom_call.1']
    #allocation5 [shape = 's32[2]{0}', space=sflag, size = 0x8, scoped, tag = 'scoped memory for tpu_custom_call.1']
    #allocation6 [shape = 'u8[4096]{0}', space=vmem, size = 0x1000, scoped, tag = 'input window, operand 1']
    #allocation7 [shape = 's32[2]{0}', space=sflag, size = 0x8, scoped, tag = 'scoped memory for tpu_custom_call.1']
    #allocation8 [shape = 'u8[4096]{0}', space=vmem, size = 0x1000, scoped, tag = 'input window, operand 2']
    #allocation9 [shape = 'u8[512]{0}', space=smem, size = 0x200, scoped, tag = 'input window, operand 3, single buffered']
    #allocation10 [shape = 'u8[512]{0}', space=smem, size = 0x200, scoped, tag = 'input window, operand 4, single buffered']
    #allocation11 [shape = 's32[1]{0}', space=sflag, size = 0x4, scoped, tag = 'scoped memory for tpu_custom_call.1']
    #allocation12 [shape = 'u8[4096]{0}', space=vmem, size = 0x1000, scoped, tag = 'output window, operand 0']
    %10 = vsyncpa [#allocation3], 0
    %s11 = scalar_lea.sflag [#allocation3], 1
    %12 = vsyncpa %s11, 0
    %13 = vsyncpa [#allocation7], 0
    %s14 = scalar_lea.sflag [#allocation7], 1
    %15 = vsyncpa %s14, 0
    %16 = vsyncpa [#allocation5], 0
    %17 = vsyncpa [#allocation11], 0
    %18 = vsyncpa [#allocation4], 0
    %s19 = scalar_lea.sflag [#allocation4], 1
    %20 = vsyncpa %s19, 0
    loop: start=0, step=1, limit=6
    $region2: #{tpu_custom_call.1} parent=1 // loop_pre_header
      _
    $region3: #{tpu_custom_call.1} parent=1 // loop_header
      %s22 = sphi 0, %s26
      %p23 = scmp.ge.s32.totalorder %s22, 6
      %s29 = sphi 0, %s41
      %s30 = sphi 0, %s37
      %s31 = sphi 0, %s29
      %s32 = sphi 0, %s30
      %s33 = sphi 0, %s31
      %s34 = sphi 0, %s32
      %s46 = sphi 0, %s48
      %s49 = sphi 0, %s46
      %s50 = sphi 0, %s49
      %s66 = sphi 0, %s50
      %s74 = sphi 0, %s76
      %s77 = sphi 0, %s74
      %s78 = sphi 0, %s77
      %s94 = sphi 0, %s78
      %s102 = sphi 0, %s104
      %s105 = sphi 0, %s102
      %s106 = sphi 0, %s105
      %s122 = sphi 0, %s106
      %s126 = sphi 0, %s126
      %s128 = sphi 0, %s126
      %s129 = sphi 0, %s128
      %s143 = sphi 0, %s129
      %s147 = sphi 0, %s147
      %s149 = sphi 0, %s147
      %s150 = sphi 0, %s149
      %s164 = sphi 0, %s150
      %s172 = sphi 0, %s174
      %s175 = sphi 0, %s172
      %s176 = sphi 0, %s175
      %s192 = sphi 0, %s176
    $region4: #{tpu_custom_call.1} parent=1 // loop_header_branch
      %25 = sbr.rel (%p23) target = $region8
    $region5: #{tpu_custom_call.1} parent=1 // loop_body
      %s27 = ssub.s32 %s22, 1
      %s28 = ssub.s32 %s22, 2
      %s35 = sadd.s32 1, %s30
      %p36 = scmp.ge.s32.totalorder %s35, 2
      %s37 = scalar_select %p36, 0, %s35
      %s38 = sadd.s32 1, %s29
      %s39 = scalar_select %p36, %s38, %s29
      %p40 = scmp.ge.s32.totalorder %s39, 2
      %s41 = scalar_select %p40, 0, %s39
      %s42 = ssub.s32 %s29, %s41
      %s43 = ssub.s32 %s30, %s37
      %s44 = sor.u32 %s42, %s43
      %p45 = scmp.eq.s32.totalorder %s44, 0
      %s47 = sadd.s32 %s46, 1
      %s48 = scalar_select %p45, %s46, %s47
      %p51 = pneg %p45
      %p52 = scmp.eq.s32.totalorder %s22, 3
      %p53 = por %p51, %p52
      %p54 = scmp.ne.s32.totalorder %s46, %s49
      %p55 = scmp.eq.s32.totalorder %s22, 0
      %p56 = por %p54, %p55
      %p57 = scmp.ne.s32.totalorder %s46, %s49
      %p58 = scmp.eq.s32.totalorder %s27, 3
      %p59 = por %p57, %p58
      %p60 = scmp.ne.s32.totalorder %s49, %s50
      %p61 = scmp.eq.s32.totalorder %s27, 0
      %p62 = por %p60, %p61
      %p63 = scmp.ne.s32.totalorder %s49, %s50
      %p64 = scmp.eq.s32.totalorder %s28, 3
      %p65 = por %p63, %p64
      %p67 = scmp.ne.s32.totalorder %s50, %s66
      %p68 = scmp.eq.s32.totalorder %s28, 0
      %p69 = por %p67, %p68
      %s70 = ssub.s32 %s29, %s41
      %s71 = ssub.s32 %s30, %s37
      %s72 = sor.u32 %s70, %s71
      %p73 = scmp.eq.s32.totalorder %s72, 0
      %s75 = sadd.s32 %s74, 1
      %s76 = scalar_select %p73, %s74, %s75
      %p79 = pneg %p73
      %p80 = scmp.eq.s32.totalorder %s22, 3
      %p81 = por %p79, %p80
      %p82 = scmp.ne.s32.totalorder %s74, %s77
      %p83 = scmp.eq.s32.totalorder %s22, 0
      %p84 = por %p82, %p83
      %p85 = scmp.ne.s32.totalorder %s74, %s77
      %p86 = scmp.eq.s32.totalorder %s27, 3
      %p87 = por %p85, %p86
      %p88 = scmp.ne.s32.totalorder %s77, %s78
      %p89 = scmp.eq.s32.totalorder %s27, 0
      %p90 = por %p88, %p89
      %p91 = scmp.ne.s32.totalorder %s77, %s78
      %p92 = scmp.eq.s32.totalorder %s28, 3
      %p93 = por %p91, %p92
      %p95 = scmp.ne.s32.totalorder %s78, %s94
      %p96 = scmp.eq.s32.totalorder %s28, 0
      %p97 = por %p95, %p96
      %s98 = ssub.s32 %s29, %s41
      %s99 = ssub.s32 %s30, %s37
      %s100 = sor.u32 %s98, %s99
      %p101 = scmp.eq.s32.totalorder %s100, 0
      %s103 = sadd.s32 %s102, 1
      %s104 = scalar_select %p101, %s102, %s103
      %p107 = pneg %p101
      %p108 = scmp.eq.s32.totalorder %s22, 3
      %p109 = por %p107, %p108
      %p110 = scmp.ne.s32.totalorder %s102, %s105
      %p111 = scmp.eq.s32.totalorder %s22, 0
      %p112 = por %p110, %p111
      %p113 = scmp.ne.s32.totalorder %s102, %s105
      %p114 = scmp.eq.s32.totalorder %s27, 3
      %p115 = por %p113, %p114
      %p116 = scmp.ne.s32.totalorder %s105, %s106
      %p117 = scmp.eq.s32.totalorder %s27, 0
      %p118 = por %p116, %p117
      %p119 = scmp.ne.s32.totalorder %s105, %s106
      %p120 = scmp.eq.s32.totalorder %s28, 3
      %p121 = por %p119, %p120
      %p123 = scmp.ne.s32.totalorder %s106, %s122
      %p124 = scmp.eq.s32.totalorder %s28, 0
      %p125 = por %p123, %p124
      %s127 = sadd.s32 %s126, 1
      %p130 = scmp.eq.s32.totalorder %s22, 3
      %p131 = scmp.ne.s32.totalorder %s126, %s128
      %p132 = scmp.eq.s32.totalorder %s22, 0
      %p133 = por %p131, %p132
      %p134 = scmp.ne.s32.totalorder %s126, %s128
      %p135 = scmp.eq.s32.totalorder %s27, 3
      %p136 = por %p134, %p135
      %p137 = scmp.ne.s32.totalorder %s128, %s129
      %p138 = scmp.eq.s32.totalorder %s27, 0
      %p139 = por %p137, %p138
      %p140 = scmp.ne.s32.totalorder %s128, %s129
      %p141 = scmp.eq.s32.totalorder %s28, 3
      %p142 = por %p140, %p141
      %p144 = scmp.ne.s32.totalorder %s129, %s143
      %p145 = scmp.eq.s32.totalorder %s28, 0
      %p146 = por %p144, %p145
      %s148 = sadd.s32 %s147, 1
      %p151 = scmp.eq.s32.totalorder %s22, 3
      %p152 = scmp.ne.s32.totalorder %s147, %s149
      %p153 = scmp.eq.s32.totalorder %s22, 0
      %p154 = por %p152, %p153
      %p155 = scmp.ne.s32.totalorder %s147, %s149
      %p156 = scmp.eq.s32.totalorder %s27, 3
      %p157 = por %p155, %p156
      %p158 = scmp.ne.s32.totalorder %s149, %s150
      %p159 = scmp.eq.s32.totalorder %s27, 0
      %p160 = por %p158, %p159
      %p161 = scmp.ne.s32.totalorder %s149, %s150
      %p162 = scmp.eq.s32.totalorder %s28, 3
      %p163 = por %p161, %p162
      %p165 = scmp.ne.s32.totalorder %s150, %s164
      %p166 = scmp.eq.s32.totalorder %s28, 0
      %p167 = por %p165, %p166
      %s168 = ssub.s32 %s29, %s41
      %s169 = ssub.s32 %s30, %s37
      %s170 = sor.u32 %s168, %s169
      %p171 = scmp.eq.s32.totalorder %s170, 0
      %s173 = sadd.s32 %s172, 1
      %s174 = scalar_select %p171, %s172, %s173
      %p177 = pneg %p171
      %p178 = scmp.eq.s32.totalorder %s22, 3
      %p179 = por %p177, %p178
      %p180 = scmp.ne.s32.totalorder %s172, %s175
      %p181 = scmp.eq.s32.totalorder %s22, 0
      %p182 = por %p180, %p181
      %p183 = scmp.ne.s32.totalorder %s172, %s175
      %p184 = scmp.eq.s32.totalorder %s27, 3
      %p185 = por %p183, %p184
      %p186 = scmp.ne.s32.totalorder %s175, %s176
      %p187 = scmp.eq.s32.totalorder %s27, 0
      %p188 = por %p186, %p187
      %p189 = scmp.ne.s32.totalorder %s175, %s176
      %p190 = scmp.eq.s32.totalorder %s28, 3
      %p191 = por %p189, %p190
      %p193 = scmp.ne.s32.totalorder %s176, %s192
      %p194 = scmp.eq.s32.totalorder %s28, 0
      %p195 = por %p193, %p194
      %p196 = scmp.le.s32.totalorder 1, %s22
      %p197 = scmp.lt.s32.totalorder %s22, 5
      %p198 = pnand %p196, %p197
      %p199 = pneg %p198
      // Predicated region
      $region9: #{tpu_custom_call.1} parent=5 // pred_check
        _
      $region10: #{tpu_custom_call.1} parent=5 // pred_check_branch
        %201 = sbr.rel (%p198) target = $region12
      $region11: #{tpu_custom_call.1} parent=5 // pred_region
        %s202 = ssub.s32 %s22, 1
        // Predicated region
        $region13: #{tpu_custom_call.1} parent=11 // pred_check
          %p203 = pneg %p139
        $region14: #{tpu_custom_call.1} parent=11 // pred_check_branch
          %205 = sbr.rel (%p203) target = $region16
        $region15: #{tpu_custom_call.1} parent=11 // pred_region
          %207 = vsyncadd [#allocation5], 0
          %s209 = sshll.u32 %s3, 4
          %s210 = int_to_ptr.vmem [resolvable:$true] %s209
          %212 = dma.vmem_to_smem %s210, 16, [#allocation9], [#allocation5]
        $region16: #{tpu_custom_call.1} parent=11 // pred_fallthru
          _
        // Predicated region
        $region17: #{tpu_custom_call.1} parent=11 // pred_check
          %p213 = pneg %p160
        $region18: #{tpu_custom_call.1} parent=11 // pred_check_branch
          %215 = sbr.rel (%p213) target = $region20
        $region19: #{tpu_custom_call.1} parent=11 // pred_region
          %217 = vsyncadd [#allocation11], 0
          %s219 = sshll.u32 %s4, 4
          %s220 = int_to_ptr.vmem [resolvable:$true] %s219
          %222 = dma.vmem_to_smem %s220, 16, [#allocation10], [#allocation11]
        $region20: #{tpu_custom_call.1} parent=11 // pred_fallthru
          _
      $region12: #{tpu_custom_call.1} parent=5 // pred_fallthru
        _
      %p223 = scmp.lt.s32.totalorder %s22, 4
      // Predicated region
      $region21: #{tpu_custom_call.1} parent=5 // pred_check
        %p224 = pneg %p223
      $region22: #{tpu_custom_call.1} parent=5 // pred_check_branch
        %226 = sbr.rel (%p224) target = $region24
      $region23: #{tpu_custom_call.1} parent=5 // pred_region
        // Predicated region
        $region25: #{tpu_custom_call.1} parent=23 // pred_check
          %p227 = pneg %p56
        $region26: #{tpu_custom_call.1} parent=23 // pred_check_branch
          %229 = sbr.rel (%p227) target = $region28
        $region27: #{tpu_custom_call.1} parent=23 // pred_region
          %s230 = sand.u32 %s46, 1
          %s231 = scalar_lea.sflag [#allocation3], %s230
          %s232 = sand.u32 %s46, 1
          %s233 = smul.addr %s232, 4
          %s234 = scalar_lea.vmem [#allocation2], %s233
          %236 = vsyncadd %s231, 0
          %s237 = smul.addr %s29, 2
          %s238 = sadd.s32 %s30, %s237
          %s239 = smul.addr %s238, 4
          %s240 = scalar_lea.hbm %s0, %s239
          %s242 = sshll.u32 %s240, 4
          %s243 = int_to_ptr.hbm [resolvable:$true] %s242
          %s244 = sshll.u32 %s234, 4
          %s245 = int_to_ptr.vmem [resolvable:$true] %s244
          %247 = dma.hbm_to_vmem [thread:$0]  %s243, 64, %s245, %s231
        $region28: #{tpu_custom_call.1} parent=23 // pred_fallthru
          _
        // Predicated region
        $region29: #{tpu_custom_call.1} parent=23 // pred_check
          %p248 = pneg %p84
        $region30: #{tpu_custom_call.1} parent=23 // pred_check_branch
          %250 = sbr.rel (%p248) target = $region32
        $region31: #{tpu_custom_call.1} parent=23 // pred_region
          %s251 = sand.u32 %s22, 1
          %s252 = scalar_lea.sflag [#allocation7], %s251
          %s253 = sand.u32 %s74, 1
          %s254 = smul.addr %s253, 4
          %s255 = scalar_lea.vmem [#allocation6], %s254
          %257 = vsyncadd %s252, 0
          %s258 = smul.addr %s29, 2
          %s259 = sadd.s32 %s30, %s258
          %s260 = smul.addr %s259, 4
          %s261 = scalar_lea.hbm %s1, %s260
          %s263 = sshll.u32 %s261, 4
          %s264 = int_to_ptr.hbm [resolvable:$true] %s263
          %s265 = sshll.u32 %s255, 4
          %s266 = int_to_ptr.vmem [resolvable:$true] %s265
          %268 = dma.hbm_to_vmem [thread:$0]  %s264, 64, %s266, %s252
        $region32: #{tpu_custom_call.1} parent=23 // pred_fallthru
          _
        // Predicated region
        $region33: #{tpu_custom_call.1} parent=23 // pred_check
          %p269 = pneg %p112
        $region34: #{tpu_custom_call.1} parent=23 // pred_check_branch
          %271 = sbr.rel (%p269) target = $region36
        $region35: #{tpu_custom_call.1} parent=23 // pred_region
          %s272 = sand.u32 %s22, 1
          %s273 = scalar_lea.sflag [#allocation7], %s272
          %s274 = sand.u32 %s102, 1
          %s275 = smul.addr %s274, 4
          %s276 = scalar_lea.vmem [#allocation8], %s275
          %278 = vsyncadd %s273, 0
          %s279 = smul.addr %s29, 2
          %s280 = sadd.s32 %s30, %s279
          %s281 = smul.addr %s280, 4
          %s282 = scalar_lea.hbm %s2, %s281
          %s284 = sshll.u32 %s282, 4
          %s285 = int_to_ptr.hbm [resolvable:$true] %s284
          %s286 = sshll.u32 %s276, 4
          %s287 = int_to_ptr.vmem [resolvable:$true] %s286
          %289 = dma.hbm_to_vmem [thread:$0]  %s285, 64, %s287, %s273
        $region36: #{tpu_custom_call.1} parent=23 // pred_fallthru
          _
      $region24: #{tpu_custom_call.1} parent=5 // pred_fallthru
        _
      %p290 = scmp.le.s32.totalorder 1, %s22
      %p291 = scmp.lt.s32.totalorder %s22, 5
      %p292 = pnand %p290, %p291
      %p293 = pneg %p292
      // Predicated region
      $region37: #{tpu_custom_call.1} parent=5 // pred_check
        _
      $region38: #{tpu_custom_call.1} parent=5 // pred_check_branch
        %295 = sbr.rel (%p292) target = $region40
      $region39: #{tpu_custom_call.1} parent=5 // pred_region
        %s296 = ssub.s32 %s22, 1
        %s297 = sand.u32 %s49, 1
        %s298 = scalar_lea.sflag [#allocation3], %s297
        %s299 = sand.u32 %s49, 1
        %s300 = smul.addr %s299, 4
        %s301 = scalar_lea.vmem [#allocation2], %s300
        // Predicated region
        $region41: #{tpu_custom_call.1} parent=39 // pred_check
          %p302 = pneg %p62
        $region42: #{tpu_custom_call.1} parent=39 // pred_check_branch
          %304 = sbr.rel (%p302) target = $region44
        $region43: #{tpu_custom_call.1} parent=39 // pred_region
          %306 = dma.done %s298, 64
        $region44: #{tpu_custom_call.1} parent=39 // pred_fallthru
          _
        %s307 = sand.u32 %s27, 1
        %s308 = scalar_lea.sflag [#allocation7], %s307
        %s309 = sand.u32 %s77, 1
        %s310 = smul.addr %s309, 4
        %s311 = scalar_lea.vmem [#allocation6], %s310
        // Predicated region
        $region45: #{tpu_custom_call.1} parent=39 // pred_check
          %p312 = pneg %p90
        $region46: #{tpu_custom_call.1} parent=39 // pred_check_branch
          %314 = sbr.rel (%p312) target = $region48
        $region47: #{tpu_custom_call.1} parent=39 // pred_region
          %316 = dma.done %s308, 64
        $region48: #{tpu_custom_call.1} parent=39 // pred_fallthru
          _
        %s317 = sand.u32 %s27, 1
        %s318 = scalar_lea.sflag [#allocation7], %s317
        %s319 = sand.u32 %s105, 1
        %s320 = smul.addr %s319, 4
        %s321 = scalar_lea.vmem [#allocation8], %s320
        // Predicated region
        $region49: #{tpu_custom_call.1} parent=39 // pred_check
          %p322 = pneg %p118
        $region50: #{tpu_custom_call.1} parent=39 // pred_check_branch
          %324 = sbr.rel (%p322) target = $region52
        $region51: #{tpu_custom_call.1} parent=39 // pred_region
          %326 = dma.done %s318, 64
        $region52: #{tpu_custom_call.1} parent=39 // pred_fallthru
          _
        // Predicated region
        $region53: #{tpu_custom_call.1} parent=39 // pred_check
          %p327 = pneg %p139
        $region54: #{tpu_custom_call.1} parent=39 // pred_check_branch
          %329 = sbr.rel (%p327) target = $region56
        $region55: #{tpu_custom_call.1} parent=39 // pred_region
          %331 = dma.done [#allocation5], 16
        $region56: #{tpu_custom_call.1} parent=39 // pred_fallthru
          _
        // Predicated region
        $region57: #{tpu_custom_call.1} parent=39 // pred_check
          %p332 = pneg %p160
        $region58: #{tpu_custom_call.1} parent=39 // pred_check_branch
          %334 = sbr.rel (%p332) target = $region60
        $region59: #{tpu_custom_call.1} parent=39 // pred_region
          %336 = dma.done [#allocation11], 16
        $region60: #{tpu_custom_call.1} parent=39 // pred_fallthru
          _
        %337 = sfence
        %s338 = sand.u32 %s49, 1
        %s339 = scalar_lea.sflag [#allocation3], %s338
        %s340 = sand.u32 %s49, 1
        %s341 = smul.addr %s340, 4
        %s342 = scalar_lea.vmem [#allocation2], %s341
        %p343 = pneg %p62
        %p344 = pneg %p59
        %s345 = sand.u32 %s27, 1
        %s346 = scalar_lea.sflag [#allocation7], %s345
        %s347 = sand.u32 %s77, 1
        %s348 = smul.addr %s347, 4
        %s349 = scalar_lea.vmem [#allocation6], %s348
        %p350 = pneg %p90
        %p351 = pneg %p87
        %s352 = sand.u32 %s27, 1
        %s353 = scalar_lea.sflag [#allocation7], %s352
        %s354 = sand.u32 %s105, 1
        %s355 = smul.addr %s354, 4
        %s356 = scalar_lea.vmem [#allocation8], %s355
        %p357 = pneg %p118
        %p358 = pneg %p115
        %p359 = pneg %p139
        %p360 = pneg %p136
        %p361 = pneg %p160
        %p362 = pneg %p157
        %p363 = pneg %p188
        %p364 = pneg %p185
        %s365 = sand.u32 %s175, 1
        %s366 = scalar_lea.sflag [#allocation4], %s365
        %s367 = sand.u32 %s175, 1
        %s368 = smul.addr %s367, 4
        %s369 = scalar_lea.vmem [#allocation12], %s368
        %v370 = vld [vmem:[%s301] sm:$0xf]
        %v371 = vld [vmem:[%s311] sm:$0xf]
        %v372 = vld [vmem:[%s321] sm:$0xf]
        %s373 = sld [smem:[#allocation9]]
        %s374 = sld [smem:[#allocation9 + $0x1]]
        %s375 = sld [smem:[#allocation9 + $0x2]]
        %s376 = sld [smem:[#allocation9 + $0x3]]
        %s377 = sld [smem:[#allocation9 + $0x4]]
        %s378 = sld [smem:[#allocation9 + $0x5]]
        %s379 = sld [smem:[#allocation9 + $0x6]]
        %s380 = sld [smem:[#allocation9 + $0x7]]
        %s381 = sld [smem:[#allocation9 + $0x8]]
        %s382 = sld [smem:[#allocation9 + $0x9]]
        %s383 = sld [smem:[#allocation9 + $0xa]]
        %s384 = sld [smem:[#allocation9 + $0xb]]
        %s385 = sld [smem:[#allocation9 + $0xc]]
        %s386 = sld [smem:[#allocation9 + $0xd]]
        %s387 = sld [smem:[#allocation9 + $0xe]]
        %s388 = sld [smem:[#allocation9 + $0xf]]
        %s389 = sld [smem:[#allocation9 + $0x10]]
        %s390 = sld [smem:[#allocation9 + $0x11]]
        %s391 = sld [smem:[#allocation9 + $0x12]]
        %s392 = sld [smem:[#allocation9 + $0x13]]
        %s393 = sld [smem:[#allocation9 + $0x14]]
        %s394 = sld [smem:[#allocation9 + $0x15]]
        %s395 = sld [smem:[#allocation9 + $0x16]]
        %s396 = sld [smem:[#allocation9 + $0x17]]
        %s397 = sld [smem:[#allocation9 + $0x18]]
        %s398 = sld [smem:[#allocation9 + $0x19]]
        %s399 = sld [smem:[#allocation9 + $0x1a]]
        %s400 = sld [smem:[#allocation10]]
        %s401 = sld [smem:[#allocation10 + $0x1]]
        %403 = vrot.lane.b32.xlu0 %v371, 1
        %v404 = vpop.permute.xlu0 %403
        %407 = vrot.lane.b32.xlu0 %v370, 17
        %v408 = vpop.permute.xlu0 %407
        %411 = vrot.lane.b32.xlu0 %v372, 17
        %v412 = vpop.permute.xlu0 %411
        %vm414 = vcmask 7168
        %v415 = vsel %vm414, 0.0, %v404
        %vm416 = vcmask 138240
        %v417 = vsel %vm416, %v415, %v408
        %v418 = vsel %vm416, %v408, %v412
        %vm419 = vcmask 269312
        %v420 = vsel %vm419, %v418, 0.0
        %v421 = vlaneseq
        %v422 = vand.u32 %v421, 127
        %vm423 = vcmp.lt.s32.totalorder %v422, 0
        %v424 = vsub.s32 0, %v422
        %v425 = vsel %vm423, %v424, %v422
        %v426 = vshrl.u32 %v425, 4
        %v427 = vand.u32 %v425, 15
        %v428 = vsub.s32 0, %v427
        %v429 = vsel %vm423, %v428, %v427
        %vm430 = vcmp.ne.s32.totalorder %v429, 0
        %vm431 = vcmp.lt.s32.totalorder %v429, 0
        %vm432 = vmand %vm431, %vm430
        %v433 = vadd.s32 %v429, 16
        %v434 = vsel %vm432, %v433, %v429
        %vm435 = vcmp.ge.s32.totalorder %v434, 1
        %vm436 = vcmp.le.s32.totalorder %v434, 14
        %v437 = vsel %vm435, %v417, 0.0
        %v438 = vstv %s373
        %v439 = vmul.f32 %v438, %v437
        %v440 = vadd.f32 %v439, 0.0
        %v441 = vstv %s382
        %v442 = vmul.f32 %v441, %v437
        %v443 = vadd.f32 %v442, 0.0
        %v444 = vstv %s391
        %v445 = vmul.f32 %v444, %v437
        %v446 = vadd.f32 %v445, 0.0
        %v447 = vstv %s374
        %v448 = vmul.f32 %v447, %v417
        %v449 = vmul.f32 %v447, %v420
        %452 = vrot.lane.b32.xlu0 %v448, 127
        %v453 = vpop.permute.xlu0 %452
        %454 = vrot.lane.b32.xlu0 %v449, 127
        %v455 = vpop.permute.xlu0 %454
        %vm456 = vcmask 1039360
        %v457 = vsel %vm456, %v453, %v455
        %v459 = vadd.f32 %v440, %v457
        %v460 = vstv %s383
        %v461 = vmul.f32 %v460, %v417
        %v462 = vmul.f32 %v460, %v420
        %465 = vrot.lane.b32.xlu0 %v461, 127
        %v466 = vpop.permute.xlu0 %465
        %467 = vrot.lane.b32.xlu0 %v462, 127
        %v468 = vpop.permute.xlu0 %467
        %v469 = vsel %vm456, %v466, %v468
        %v471 = vadd.f32 %v443, %v469
        %v472 = vstv %s392
        %v473 = vmul.f32 %v472, %v417
        %v474 = vmul.f32 %v472, %v420
        %477 = vrot.lane.b32.xlu0 %v473, 127
        %v478 = vpop.permute.xlu0 %477
        %479 = vrot.lane.b32.xlu0 %v474, 127
        %v480 = vpop.permute.xlu0 %479
        %v481 = vsel %vm456, %v478, %v480
        %v483 = vadd.f32 %v446, %v481
        %486 = vrot.lane.b32.xlu0 %v417, 126
        %v487 = vpop.permute.xlu0 %486
        %488 = vrot.lane.b32.xlu0 %v420, 126
        %v489 = vpop.permute.xlu0 %488
        %vm490 = vcmask 1031168
        %v491 = vsel %vm490, %v487, %v489
        %v493 = vsel %vm436, %v491, 0.0
        %v494 = vstv %s375
        %v495 = vmul.f32 %v494, %v493
        %v496 = vadd.f32 %v459, %v495
        %v497 = vstv %s384
        %v498 = vmul.f32 %v497, %v493
        %v499 = vadd.f32 %v471, %v498
        %v500 = vstv %s393
        %v501 = vmul.f32 %v500, %v493
        %v502 = vadd.f32 %v483, %v501
        %503 = vrot.lane.b32.xlu0 %v417, 112
        %v504 = vpop.permute.xlu0 %503
        %505 = vrot.lane.b32.xlu0 %v420, 112
        %v506 = vpop.permute.xlu0 %505
        %vm507 = vcmask 916480
        %v508 = vsel %vm507, %v504, %v506
        %v510 = vsel %vm435, %v508, 0.0
        %v511 = vstv %s376
        %v512 = vmul.f32 %v511, %v510
        %v513 = vadd.f32 %v496, %v512
        %v514 = vstv %s385
        %v515 = vmul.f32 %v514, %v510
        %v516 = vadd.f32 %v499, %v515
        %v517 = vstv %s394
        %v518 = vmul.f32 %v517, %v510
        %v519 = vadd.f32 %v502, %v518
        %v520 = vstv %s377
        %v521 = vmul.f32 %v520, %v417
        %v522 = vmul.f32 %v520, %v420
        %525 = vrot.lane.b32.xlu0 %v521, 111
        %v526 = vpop.permute.xlu0 %525
        %527 = vrot.lane.b32.xlu0 %v522, 111
        %v528 = vpop.permute.xlu0 %527
        %vm529 = vcmask 908288
        %v530 = vsel %vm529, %v526, %v528
        %v532 = vadd.f32 %v513, %v530
        %v533 = vstv %s386
        %v534 = vmul.f32 %v533, %v417
        %v535 = vmul.f32 %v533, %v420
        %538 = vrot.lane.b32.xlu0 %v534, 111
        %v539 = vpop.permute.xlu0 %538
        %540 = vrot.lane.b32.xlu0 %v535, 111
        %v541 = vpop.permute.xlu0 %540
        %v542 = vsel %vm529, %v539, %v541
        %v544 = vadd.f32 %v516, %v542
        %v545 = vstv %s395
        %v546 = vmul.f32 %v545, %v417
        %v547 = vmul.f32 %v545, %v420
        %550 = vrot.lane.b32.xlu0 %v546, 111
        %v551 = vpop.permute.xlu0 %550
        %552 = vrot.lane.b32.xlu0 %v547, 111
        %v553 = vpop.permute.xlu0 %552
        %v554 = vsel %vm529, %v551, %v553
        %v556 = vadd.f32 %v519, %v554
        %557 = vrot.lane.b32.xlu0 %v417, 110
        %v558 = vpop.permute.xlu0 %557
        %559 = vrot.lane.b32.xlu0 %v420, 110
        %v560 = vpop.permute.xlu0 %559
        %vm561 = vcmask 900096
        %v562 = vsel %vm561, %v558, %v560
        %v564 = vsel %vm436, %v562, 0.0
        %v565 = vstv %s378
        %v566 = vmul.f32 %v565, %v564
        %v567 = vadd.f32 %v532, %v566
        %v568 = vstv %s387
        %v569 = vmul.f32 %v568, %v564
        %v570 = vadd.f32 %v544, %v569
        %v571 = vstv %s396
        %v572 = vmul.f32 %v571, %v564
        %v573 = vadd.f32 %v556, %v572
        %574 = vrot.lane.b32.xlu0 %v417, 96
        %v575 = vpop.permute.xlu0 %574
        %576 = vrot.lane.b32.xlu0 %v420, 96
        %v577 = vpop.permute.xlu0 %576
        %vm578 = vcmask 785408
        %v579 = vsel %vm578, %v575, %v577
        %v581 = vsel %vm435, %v579, 0.0
        %v582 = vstv %s379
        %v583 = vmul.f32 %v582, %v581
        %v584 = vadd.f32 %v567, %v583
        %v585 = vstv %s388
        %v586 = vmul.f32 %v585, %v581
        %v587 = vadd.f32 %v570, %v586
        %v588 = vstv %s397
        %v589 = vmul.f32 %v588, %v581
        %v590 = vadd.f32 %v573, %v589
        %v591 = vstv %s380
        %v592 = vmul.f32 %v591, %v417
        %v593 = vmul.f32 %v591, %v420
        %596 = vrot.lane.b32.xlu0 %v592, 95
        %v597 = vpop.permute.xlu0 %596
        %598 = vrot.lane.b32.xlu0 %v593, 95
        %v599 = vpop.permute.xlu0 %598
        %vm600 = vcmask 777216
        %v601 = vsel %vm600, %v597, %v599
        %v603 = vadd.f32 %v584, %v601
        %v604 = vstv %s389
        %v605 = vmul.f32 %v604, %v417
        %v606 = vmul.f32 %v604, %v420
        %609 = vrot.lane.b32.xlu0 %v605, 95
        %v610 = vpop.permute.xlu0 %609
        %611 = vrot.lane.b32.xlu0 %v606, 95
        %v612 = vpop.permute.xlu0 %611
        %v613 = vsel %vm600, %v610, %v612
        %v615 = vadd.f32 %v587, %v613
        %v616 = vstv %s398
        %v617 = vmul.f32 %v616, %v417
        %v618 = vmul.f32 %v616, %v420
        %621 = vrot.lane.b32.xlu0 %v617, 95
        %v622 = vpop.permute.xlu0 %621
        %623 = vrot.lane.b32.xlu0 %v618, 95
        %v624 = vpop.permute.xlu0 %623
        %v625 = vsel %vm600, %v622, %v624
        %v627 = vadd.f32 %v590, %v625
        %628 = vrot.lane.b32.xlu0 %v417, 94
        %v629 = vpop.permute.xlu0 %628
        %630 = vrot.lane.b32.xlu0 %v420, 94
        %v631 = vpop.permute.xlu0 %630
        %vm632 = vcmask 769024
        %v633 = vsel %vm632, %v629, %v631
        %v635 = vsel %vm436, %v633, 0.0
        %v636 = vstv %s381
        %v637 = vmul.f32 %v636, %v635
        %v638 = vadd.f32 %v603, %v637
        %v639 = vstv %s390
        %v640 = vmul.f32 %v639, %v635
        %v641 = vadd.f32 %v615, %v640
        %v642 = vstv %s399
        %v643 = vmul.f32 %v642, %v635
        %v644 = vadd.f32 %v627, %v643
        %v646 = vrot.slane %v638, 7
        %vm648 = vcmask 1040384
        %v649 = vsel %vm648, 0.0, %v646
        %v650 = vadd.f32 %v641, %v649
        %v652 = vrot.slane %v644, 1
        %vm654 = vcmask 1042432
        %v655 = vsel %vm654, %v652, 0.0
        %v656 = vadd.f32 %v650, %v655
        %v657 = vstv %s400
        %v658 = vadd.f32 %v656, %v657
        %v659 = vxor.u32 %v658, 2147483648
        %v660 = vmul.f32 %v659, 1.442695
        %v661 = vpow.pop %v660
        %v662 = vadd.f32 %v661, 1.0
        %v663 = vrcp.pop %v662
        %v664 = vmul.f32 %v662, %v663
        %v665 = vsub.f32 1.0, %v664
        %v666 = vmul.f32 %v663, %v665
        %v667 = vadd.f32 %v663, %v666
        %vm668 = vweird.f32 %v662
        %vm669 = vweird.f32 %v663
        %vm670 = vmor %vm668, %vm669
        %v671 = vsel %vm670, %v663, %v667
        %v672 = vand.u32 2147483647, %v662
        %vm673 = vcmp.eq.f32.partialorder %v672, 8.507059e+37
        %v674 = vand.u32 %v662, 2147483648
        %v675 = vor.u32 1.1754944e-38, %v674
        %v676 = vsel %vm673, %v675, %v671
        %v677 = vmul.f32 1.0, %v676
        %v678 = vstv %s401
        %v679 = vmul.f32 %v678, %v677
        %v680 = vmul.f32 %v370, %v679
        %v681 = vadd.f32 %v680, %v370
        %682 = vst [vmem:[%s369] sm:$0xf] %v681
        %s683 = sand.u32 %s175, 1
        %s684 = scalar_lea.sflag [#allocation4], %s683
        %s685 = sand.u32 %s175, 1
        %s686 = smul.addr %s685, 4
        %s687 = scalar_lea.vmem [#allocation12], %s686
        // Predicated region
        $region61: #{tpu_custom_call.1} parent=39 // pred_check
          %p688 = pneg %p185
        $region62: #{tpu_custom_call.1} parent=39 // pred_check_branch
          %690 = sbr.rel (%p688) target = $region64
        $region63: #{tpu_custom_call.1} parent=39 // pred_region
          %692 = vsyncadd %s684, 0
          %s693 = smul.addr %s31, 2
          %s694 = sadd.s32 %s32, %s693
          %s695 = smul.addr %s694, 4
          %s696 = scalar_lea.hbm %s5, %s695
          %s698 = sshll.u32 %s687, 4
          %s699 = int_to_ptr.vmem [resolvable:$true] %s698
          %s700 = sshll.u32 %s696, 4
          %s701 = int_to_ptr.hbm [resolvable:$true] %s700
          %703 = dma.vmem_to_hbm [thread:$0]  %s699, 64, %s701, %s684
        $region64: #{tpu_custom_call.1} parent=39 // pred_fallthru
          _
      $region40: #{tpu_custom_call.1} parent=5 // pred_fallthru
        _
      %p704 = scmp.le.s32.totalorder 2, %s22
      // Predicated region
      $region65: #{tpu_custom_call.1} parent=5 // pred_check
        %p705 = pneg %p704
      $region66: #{tpu_custom_call.1} parent=5 // pred_check_branch
        %707 = sbr.rel (%p705) target = $region68
      $region67: #{tpu_custom_call.1} parent=5 // pred_region
        %s708 = ssub.s32 %s22, 2
        // Predicated region
        $region69: #{tpu_custom_call.1} parent=67 // pred_check
          %p709 = pneg %p191
        $region70: #{tpu_custom_call.1} parent=67 // pred_check_branch
          %711 = sbr.rel (%p709) target = $region72
        $region71: #{tpu_custom_call.1} parent=67 // pred_region
          %s712 = sand.u32 %s176, 1
          %s713 = scalar_lea.sflag [#allocation4], %s712
          %s714 = sand.u32 %s176, 1
          %s715 = smul.addr %s714, 4
          %s716 = scalar_lea.vmem [#allocation12], %s715
          %718 = dma.done %s713, 64
        $region72: #{tpu_custom_call.1} parent=67 // pred_fallthru
          _
      $region68: #{tpu_custom_call.1} parent=5 // pred_fallthru
        _
    $region6: #{tpu_custom_call.1} parent=1 // loop_footer
      %s26 = sadd.s32 1, %s22
    $region7: #{tpu_custom_call.1} parent=1 // loop_footer_branch
      %21 = sbr.rel target = $region3
    $region8: #{tpu_custom_call.1} parent=1 // loop_exit
      _
    %719 = vsyncpa [#allocation3], 1
    %s720 = scalar_lea.sflag [#allocation3], 1
    %721 = vsyncpa %s720, 1
    %722 = vsyncpa [#allocation7], 1
    %s723 = scalar_lea.sflag [#allocation7], 1
    %724 = vsyncpa %s723, 1
    %725 = vsyncpa [#allocation4], 1
    %s726 = scalar_lea.sflag [#allocation4], 1
    %727 = vsyncpa %s726, 1
    %728 = vsyncpa [#allocation5], 1
    %s729 = scalar_lea.sflag [#allocation5], 1
    %730 = vsyncpa %s729, 1
    %731 = vsyncpa [#allocation11], 1

</llo_original>
